<compile_context>
chip_gen: v7x
topology: tpu7x:2x2x1
jax: 0.10.0
libtpu: 0.0.40
codegen_flags: <defaults>
</compile_context>

<pallas_src>
import jax
import jax.numpy as jnp
from jax.experimental import pallas as pl
from jax.experimental.pallas import tpu as pltpu


def _round_up(n, m):
    return ((n + m - 1) // m) * m


def mlp_kernel(xT_ref, w1a_ref, w2_ref, b2_ref, oT_ref):
    # xT_ref : [8, TB]   rows 0..3 = features, row 4 = ones, rows 5..7 = zeros
    # w1a_ref: [128, 8]  cols 0..3 = W1, col 4 = b1, cols 5..7 = zeros
    # w2_ref : [3, 128], b2_ref: [3, 1]
    # oT_ref : [3, TB]   (class-major, lane-dense output)

    # fc1 (+bias, via augmentation) on the MXU, f32 accumulation.
    h = jnp.dot(w1a_ref[...], xT_ref[...],
                preferred_element_type=jnp.float32)          # [128, TB]
    h = jnp.maximum(h, 0.0)                                  # ReLU (VPU)

    # fc2 (K=128) on the MXU: [3,128] @ [128,TB] -> [3,TB].
    logits = jnp.dot(w2_ref[...], h,
                     preferred_element_type=jnp.float32)     # [3, TB]
    logits = logits + b2_ref[...]                            # [3,1] broadcast

    # Softmax over the class axis (axis=0 -> cheap 3-row sublane reduce).
    m = jnp.max(logits, axis=0, keepdims=True)               # [1, TB]
    e = jnp.exp(logits - m)                                  # [3, TB]
    denom = jnp.sum(e, axis=0, keepdims=True)                # [1, TB]
    # Exact divide: rows sum to 1 within f32 precision (fixes prior failure).
    oT_ref[...] = e / denom


def classifier_forward(x, w1, b1, w2, b2, *, tb=8192):
    """x: [B, 4] float32. Torch-layout params: w1 [128,4], b1 [128],
    w2 [3,128], b2 [3]. Returns softmax probabilities [B, 3]."""
    B = x.shape[0]

    # Batch-tile selection (satisfies (8,128) block rules):
    #  - small B: single grid step, TB == padded B (multiple of 8)
    #  - large B: >= 2 grid steps (keeps both v7x TCs busy), TB multiple of 128,
    #    capped at tb (~8192 keeps the [128,TB] f32 intermediate at 4 MiB).
    if B <= 1024:
        TB = max(_round_up(B, 8), 8)
        B_pad = TB
    else:
        TB = min(tb, _round_up(pl.cdiv(B, 2), 128))
        B_pad = _round_up(B, TB)

    # Lane-dense, bias-augmented input: [8, B_pad] (batch on lanes).
    # TODO(synk): if the consumer can take class-major [3,B] (or fuse the
    # transposes), skip the wrapper-side transpose passes entirely.
    xT = x.T.astype(jnp.float32)                                      # [4, B]
    xT_aug = jnp.concatenate(
        [xT,
         jnp.ones((1, B), jnp.float32),
         jnp.zeros((3, B), jnp.float32)], axis=0)                     # [8, B]
    xT_aug = jnp.pad(xT_aug, ((0, 0), (0, B_pad - B)))                # [8, B_pad]

    # Bias folded into the fc1 weight matrix (K padded 5 -> 8 for alignment).
    w1_aug = jnp.concatenate(
        [w1.astype(jnp.float32),
         b1.astype(jnp.float32)[:, None],
         jnp.zeros((128, 3), jnp.float32)], axis=1)                   # [128, 8]
    b2_col = b2.astype(jnp.float32)[:, None]                          # [3, 1]

    grid = (B_pad // TB,)
    flops = 2 * B_pad * (8 * 128 + 128 * 3)
    bytes_accessed = (8 + 3) * B_pad * 4 + (128 * 8 + 3 * 128 + 3) * 4

    outT = pl.pallas_call(
        mlp_kernel,
        out_shape=jax.ShapeDtypeStruct((3, B_pad), jnp.float32),
        grid=grid,
        in_specs=[
            pl.BlockSpec((8, TB), lambda i: (0, i)),      # xT tile (streamed)
            pl.BlockSpec((128, 8), lambda i: (0, 0)),     # w1_aug (VMEM-resident)
            pl.BlockSpec((3, 128), lambda i: (0, 0)),     # w2
            pl.BlockSpec((3, 1), lambda i: (0, 0)),       # b2
        ],
        out_specs=pl.BlockSpec((3, TB), lambda i: (0, i)),
        compiler_params=pltpu.CompilerParams(
            dimension_semantics=("parallel",),            # shard batch across TCs
            vmem_limit_bytes=32 * 1024 * 1024,            # headroom for TB=8192
        ),
        cost_estimate=pl.CostEstimate(
            flops=flops,
            transcendentals=3 * B_pad,                    # exp (3 per sample)
            bytes_accessed=bytes_accessed,
        ),
    )(xT_aug, w1_aug, w2.astype(jnp.float32), b2_col)

    # Back to the PyTorch layout [B, 3]; drop batch padding.
    return outT[:, :B].T


def init_params(key):
    # nn.Linear-style U(-1/sqrt(fan_in), 1/sqrt(fan_in)) init, torch layout.
    k1, k2, k3, k4 = jax.random.split(key, 4)
    bound1 = 1.0 / jnp.sqrt(4.0)
    bound2 = 1.0 / jnp.sqrt(128.0)
    w1 = jax.random.uniform(k1, (128, 4), jnp.float32, -bound1, bound1)
    b1 = jax.random.uniform(k2, (128,), jnp.float32, -bound1, bound1)
    w2 = jax.random.uniform(k3, (3, 128), jnp.float32, -bound2, bound2)
    b2 = jax.random.uniform(k4, (3,), jnp.float32, -bound2, bound2)
    return w1, b1, w2, b2


def reference_forward(x, w1, b1, w2, b2):
    h = jnp.maximum(x @ w1.T + b1, 0.0)
    logits = h @ w2.T + b2
    return jax.nn.softmax(logits, axis=1)


if __name__ == "__main__":
    key = jax.random.PRNGKey(0)
    kx, kx2, kp = jax.random.split(key, 3)
    w1, b1, w2, b2 = init_params(kp)

    # Small batch (single grid step).
    B = 8
    x = jax.random.normal(kx, (B, 4), jnp.float32)
    out = jax.block_until_ready(classifier_forward(x, w1, b1, w2, b2))
    ref = reference_forward(x, w1, b1, w2, b2)
    assert out.shape == (B, 3)
    assert jnp.allclose(out, ref, atol=2e-3, rtol=2e-3)
    assert jnp.allclose(jnp.sum(out, axis=1), jnp.ones((B,)), atol=2e-3)

    # Larger, non-multiple batch: exercises the tiled (>=2 step) grid + padding.
    B2 = 2500
    x2 = jax.random.normal(kx2, (B2, 4), jnp.float32)
    out2 = jax.block_until_ready(classifier_forward(x2, w1, b1, w2, b2))
    ref2 = reference_forward(x2, w1, b1, w2, b2)
    assert out2.shape == (B2, 3)
    assert jnp.allclose(out2, ref2, atol=2e-3, rtol=2e-3)
    assert jnp.allclose(jnp.sum(out2, axis=1), jnp.ones((B2,)), atol=2e-3)

    print("KERNEL_OK")
</pallas_src>

<mosaic_0001>
module attributes {stable_mosaic.version = 11 : i64} {
  func.func @mlp_kernel(%arg0: i32, %arg1: memref<8x8xf32, #tpu.memory_space<vmem>>, %arg2: memref<128x8xf32, #tpu.memory_space<vmem>>, %arg3: memref<3x128xf32, #tpu.memory_space<vmem>>, %arg4: memref<3x1xf32, #tpu.memory_space<vmem>>, %arg5: memref<3x8xf32, #tpu.memory_space<vmem>>) attributes {dimension_semantics = [#tpu.dimension_semantics<parallel>], iteration_bounds = array<i64: 1>, scalar_prefetch = 0 : i64, scratch_operands = 0 : i64, tpu.core_type = #tpu.core_type<tc>, window_params = [{transform_indices = @transform_0, window_bounds = array<i64: 8, 8>}, {pipeline_mode = #tpu.pipeline_mode<synchronous>, transform_indices = @transform_1, window_bounds = array<i64: 128, 8>}, {pipeline_mode = #tpu.pipeline_mode<synchronous>, transform_indices = @transform_2, window_bounds = array<i64: 3, 128>}, {pipeline_mode = #tpu.pipeline_mode<synchronous>, transform_indices = @transform_3, window_bounds = array<i64: 3, 1>}, {transform_indices = @transform_4, window_bounds = array<i64: 3, 8>}]} {
    %c0 = arith.constant 0 : index
    %c0_0 = arith.constant 0 : index
    %0 = vector.load %arg2[%c0, %c0_0] : memref<128x8xf32, #tpu.memory_space<vmem>>, vector<128x8xf32>
    %c0_1 = arith.constant 0 : index
    %c0_2 = arith.constant 0 : index
    %1 = vector.load %arg1[%c0_1, %c0_2] : memref<8x8xf32, #tpu.memory_space<vmem>>, vector<8x8xf32>
    %cst = arith.constant dense<0.000000e+00> : vector<128x8xf32>
    %2 = tpu.matmul %0, %1, %cst {dimension_numbers = #tpu.dot_dimension_numbers<[1], [0], [0], [1], [0, 0, 1, 1], [], []>} : vector<128x8xf32>, vector<8x8xf32>, vector<128x8xf32> -> vector<128x8xf32>
    %cst_3 = arith.constant 0.000000e+00 : f32
    %3 = vector.broadcast %cst_3 : f32 to vector<128x8xf32>
    %4 = arith.maximumf %2, %3 : vector<128x8xf32>
    %c0_4 = arith.constant 0 : index
    %c0_5 = arith.constant 0 : index
    %5 = vector.load %arg3[%c0_4, %c0_5] : memref<3x128xf32, #tpu.memory_space<vmem>>, vector<3x128xf32>
    %cst_6 = arith.constant dense<0.000000e+00> : vector<3x8xf32>
    %6 = tpu.matmul %5, %4, %cst_6 {dimension_numbers = #tpu.dot_dimension_numbers<[1], [0], [0], [1], [0, 0, 1, 1], [], []>} : vector<3x128xf32>, vector<128x8xf32>, vector<3x8xf32> -> vector<3x8xf32>
    %c0_7 = arith.constant 0 : index
    %c0_8 = arith.constant 0 : index
    %7 = vector.load %arg4[%c0_7, %c0_8] : memref<3x1xf32, #tpu.memory_space<vmem>>, vector<3x1xf32>
    %8 = vector.broadcast %7 : vector<3x1xf32> to vector<3x8xf32>
    %9 = arith.addf %6, %8 : vector<3x8xf32>
    %cst_9 = arith.constant dense<0xFF800000> : vector<8xf32>
    %10 = vector.multi_reduction <maximumf>, %9, %cst_9 [0] : vector<3x8xf32> to vector<8xf32>
    %11 = vector.shape_cast %10 : vector<8xf32> to vector<1x8xf32>
    %12 = vector.broadcast %11 : vector<1x8xf32> to vector<3x8xf32>
    %13 = arith.subf %9, %12 : vector<3x8xf32>
    %14 = math.exp %13 : vector<3x8xf32>
    %cst_10 = arith.constant dense<0.000000e+00> : vector<8xf32>
    %15 = vector.multi_reduction <add>, %14, %cst_10 [0] : vector<3x8xf32> to vector<8xf32>
    %16 = vector.shape_cast %15 : vector<8xf32> to vector<1x8xf32>
    %17 = vector.broadcast %16 : vector<1x8xf32> to vector<3x8xf32>
    %18 = arith.divf %14, %17 : vector<3x8xf32>
    %c0_11 = arith.constant 0 : index
    %c0_12 = arith.constant 0 : index
    %19 = vector.load %arg5[%c0_11, %c0_12] : memref<3x8xf32, #tpu.memory_space<vmem>>, vector<3x8xf32>
    tpu.vector_store %arg5[%c0_11, %c0_12], %18 {strides = array<i32>} : memref<3x8xf32, #tpu.memory_space<vmem>>, vector<3x8xf32>,
    return
  }
  func.func @transform_0(%arg0: i32) -> (i32, i32) {
    %c0_i32 = arith.constant 0 : i32
    %c0_i32_0 = arith.constant 0 : i32
    return %c0_i32, %arg0 : i32, i32
  }
  func.func @transform_1(%arg0: i32) -> (i32, i32) {
    %c0_i32 = arith.constant 0 : i32
    %c0_i32_0 = arith.constant 0 : i32
    %c0_i32_1 = arith.constant 0 : i32
    return %c0_i32, %c0_i32_0 : i32, i32
  }
  func.func @transform_2(%arg0: i32) -> (i32, i32) {
    %c0_i32 = arith.constant 0 : i32
    %c0_i32_0 = arith.constant 0 : i32
    %c0_i32_1 = arith.constant 0 : i32
    return %c0_i32, %c0_i32_0 : i32, i32
  }
  func.func @transform_3(%arg0: i32) -> (i32, i32) {
    %c0_i32 = arith.constant 0 : i32
    %c0_i32_0 = arith.constant 0 : i32
    %c0_i32_1 = arith.constant 0 : i32
    return %c0_i32, %c0_i32_0 : i32, i32
  }
  func.func @transform_4(%arg0: i32) -> (i32, i32) {
    %c0_i32 = arith.constant 0 : i32
    %c0_i32_0 = arith.constant 0 : i32
    return %c0_i32, %arg0 : i32, i32
  }
}

</mosaic_0001>

<llo_original>
// kernel: tpu_custom_call.1
$region0: #{tpu_custom_call.1}
  #allocation0 [shape = 'u32[]', space=smem, size = 0x4, offset = 0x4, fixed_abs, tag = 'smem constant byte address 0x4 - core index']
  #allocation1 [shape = 'u32[144,128]{1,0:T(1,128)}', space=vmem, size = 0x12000, scoped, tag = 'internal scratch']
  %s0 = inlined_call_operand.vmem [shape: f32[8,8], index: 0, kind: input, shape index: {}]
  %s1 = inlined_call_operand.vmem [shape: f32[128,8], index: 1, kind: input, shape index: {}]
  %s2 = inlined_call_operand.vmem [shape: f32[3,128], index: 2, kind: input, shape index: {}]
  %s3 = inlined_call_operand.vmem [shape: f32[3,1], index: 3, kind: input, shape index: {}]
  %s4 = inlined_call_operand.hbm [shape: f32[3,8], index: 4, kind: output, shape index: {}]
  %s5 = sld [smem:[#allocation0]]
  $region26: #{tpu_custom_call.1} parent=0
    _
  %s7 = ssub.s32 1, %s5
  %s8 = scalar_select 0, %s7, %s5
  $region1: #{tpu_custom_call.1} parent=0
    #allocation2 [shape = 'u8[2048]{0}', space=vmem, size = 0x800, scoped, tag = 'output window, operand 0, single buffered']
    #allocation3 [shape = 's32[1]{0}', space=sflag, size = 0x4, scoped, tag = 'scoped memory for tpu_custom_call.1']
    %9 = vsyncpa [#allocation3], 0
    // Predicated region
    $region2: #{tpu_custom_call.1} parent=1 // pred_check
      _
    $region3: #{tpu_custom_call.1} parent=1 // pred_check_branch
      %11 = sbr.rel (0) target = $region5
    $region4: #{tpu_custom_call.1} parent=1 // pred_region
      _
    $region5: #{tpu_custom_call.1} parent=1 // pred_fallthru
      _
    // Predicated region
    $region6: #{tpu_custom_call.1} parent=1 // pred_check
      _
    $region7: #{tpu_custom_call.1} parent=1 // pred_check_branch
      %13 = sbr.rel (0) target = $region9
    $region8: #{tpu_custom_call.1} parent=1 // pred_region
      _
    $region9: #{tpu_custom_call.1} parent=1 // pred_fallthru
      _
    // Predicated region
    $region10: #{tpu_custom_call.1} parent=1 // pred_check
      _
    $region11: #{tpu_custom_call.1} parent=1 // pred_check_branch
      %15 = sbr.rel (0) target = $region13
    $region12: #{tpu_custom_call.1} parent=1 // pred_region
      _
    $region13: #{tpu_custom_call.1} parent=1 // pred_fallthru
      _
    // Predicated region
    $region14: #{tpu_custom_call.1} parent=1 // pred_check
      _
    $region15: #{tpu_custom_call.1} parent=1 // pred_check_branch
      %17 = sbr.rel (0) target = $region17
    $region16: #{tpu_custom_call.1} parent=1 // pred_region
      _
    $region17: #{tpu_custom_call.1} parent=1 // pred_fallthru
      _
    %v18 = vld [vmem:[%s1] sm:$0xff]
    %v19 = vld [vmem:[%s1 + $0x8] sm:$0xff]
    %v20 = vld [vmem:[%s1 + $0x10] sm:$0xff]
    %v21 = vld [vmem:[%s1 + $0x18] sm:$0xff]
    %v22 = vld [vmem:[%s1 + $0x20] sm:$0xff]
    %v23 = vld [vmem:[%s1 + $0x28] sm:$0xff]
    %v24 = vld [vmem:[%s1 + $0x30] sm:$0xff]
    %v25 = vld [vmem:[%s1 + $0x38] sm:$0xff]
    %v26 = vld [vmem:[%s1 + $0x40] sm:$0xff]
    %v27 = vld [vmem:[%s1 + $0x48] sm:$0xff]
    %v28 = vld [vmem:[%s1 + $0x50] sm:$0xff]
    %v29 = vld [vmem:[%s1 + $0x58] sm:$0xff]
    %v30 = vld [vmem:[%s1 + $0x60] sm:$0xff]
    %v31 = vld [vmem:[%s1 + $0x68] sm:$0xff]
    %v32 = vld [vmem:[%s1 + $0x70] sm:$0xff]
    %v33 = vld [vmem:[%s1 + $0x78] sm:$0xff]
    %v34 = vld [vmem:[%s0] sm:$0xff]
    %vm35 = vcmask 64512
    %v37 = vsel %vm35, %v18, 0
    %v40 = vsel %vm35, %v19, 0
    %v43 = vsel %vm35, %v20, 0
    %v46 = vsel %vm35, %v21, 0
    %v49 = vsel %vm35, %v22, 0
    %v52 = vsel %vm35, %v23, 0
    %v55 = vsel %vm35, %v24, 0
    %v58 = vsel %vm35, %v25, 0
    %v61 = vsel %vm35, %v26, 0
    %v64 = vsel %vm35, %v27, 0
    %v67 = vsel %vm35, %v28, 0
    %v70 = vsel %vm35, %v29, 0
    %v73 = vsel %vm35, %v30, 0
    %v76 = vsel %vm35, %v31, 0
    %v79 = vsel %vm35, %v32, 0
    %v82 = vsel %vm35, %v33, 0
    %84 = vmatprep.subr.mxu0 0.0
    %85 = vmatpush1.msra.mxu0 %v34
    %86 = vmatprep.subr.mxu0 0.0
    %87 = vmatpush1.msra.mxu0 0.0
    %88 = vmatprep.subr.mxu0 0.0
    %89 = vmatpush1.msra.mxu0 0.0
    %90 = vmatprep.subr.mxu0 0.0
    %91 = vmatpush1.msra.mxu0 0.0
    %92 = vmatprep.subr.mxu0 0.0
    %93 = vmatpush1.msra.mxu0 0.0
    %94 = vmatprep.subr.mxu0 0.0
    %95 = vmatpush1.msra.mxu0 0.0
    %96 = vmatprep.subr.mxu0 0.0
    %97 = vmatpush1.msra.mxu0 0.0
    %98 = vmatprep.subr.mxu0 0.0
    %99 = vmatpush1.msra.mxu0 0.0
    %100 = vmatprep.subr.mxu0 0.0
    %101 = vmatpush1.msra.mxu0 0.0
    %102 = vmatprep.subr.mxu0 0.0
    %103 = vmatpush1.msra.mxu0 0.0
    %104 = vmatprep.subr.mxu0 0.0
    %105 = vmatpush1.msra.mxu0 0.0
    %106 = vmatprep.subr.mxu0 0.0
    %107 = vmatpush1.msra.mxu0 0.0
    %108 = vmatprep.subr.mxu0 0.0
    %109 = vmatpush1.msra.mxu0 0.0
    %110 = vmatprep.subr.mxu0 0.0
    %111 = vmatpush1.msra.mxu0 0.0
    %112 = vmatprep.subr.mxu0 0.0
    %113 = vmatpush1.msra.mxu0 0.0
    %114 = vmatprep.subr.mxu0 0.0
    %115 = vmatpush1.msra.mxu0 0.0
    %116 = vmatprep.subr.mxu0 0.0
    %117 = vmatpush1.msra.mxu0 0.0
    %118 = vmatprep.subr.mxu0 0.0
    %119 = vmatpush1.msra.mxu0 0.0
    %120 = vmatprep.subr.mxu0 0.0
    %121 = vmatpush1.msra.mxu0 0.0
    %122 = vmatprep.subr.mxu0 0.0
    %123 = vmatpush1.msra.mxu0 0.0
    %124 = vmatprep.subr.mxu0 0.0
    %125 = vmatpush1.msra.mxu0 0.0
    %126 = vmatprep.subr.mxu0 0.0
    %127 = vmatpush1.msra.mxu0 0.0
    %128 = vmatprep.subr.mxu0 0.0
    %129 = vmatpush1.msra.mxu0 0.0
    %130 = vmatprep.subr.mxu0 0.0
    %131 = vmatpush1.msra.mxu0 0.0
    %132 = vmatprep.subr.mxu0 0.0
    %133 = vmatpush1.msra.mxu0 0.0
    %134 = vmatprep.subr.mxu0 0.0
    %135 = vmatpush1.msra.mxu0 0.0
    %136 = vmatprep.subr.mxu0 0.0
    %137 = vmatpush1.msra.mxu0 0.0
    %138 = vmatprep.subr.mxu0 0.0
    %139 = vmatpush1.msra.mxu0 0.0
    %140 = vmatprep.subr.mxu0 0.0
    %141 = vmatpush1.msra.mxu0 0.0
    %142 = vmatprep.subr.mxu0 0.0
    %143 = vmatpush1.msra.mxu0 0.0
    %144 = vmatprep.subr.mxu0 0.0
    %145 = vmatpush1.msra.mxu0 0.0
    %146 = vmatprep.subr.mxu0 0.0
    %147 = vmatpush1.msra.mxu0 0.0
    %148 = vmatprep.mubr.f32.mxu0 0.0
    %149 = vmatmul.mubr.f32.gmra.mrb[0].mxu0 %v37
    %v150 = vpop.f32.mrb[0].mxu0
    %v151 = vadd.f32 0.0, %v150
    %v152 = vpop.f32.mrb[0].mxu0
    %153 = vmatprep.mubr.f32.mxu0 0.0
    %154 = vmatmul.mubr.f32.gmra.mrb[0].mxu0 %v40
    %v155 = vpop.f32.mrb[0].mxu0
    %v156 = vadd.f32 0.0, %v155
    %v157 = vpop.f32.mrb[0].mxu0
    %158 = vmatprep.mubr.f32.mxu0 0.0
    %159 = vmatmul.mubr.f32.gmra.mrb[0].mxu0 %v43
    %v160 = vpop.f32.mrb[0].mxu0
    %v161 = vadd.f32 0.0, %v160
    %v162 = vpop.f32.mrb[0].mxu0
    %163 = vmatprep.mubr.f32.mxu0 0.0
    %164 = vmatmul.mubr.f32.gmra.mrb[0].mxu0 %v46
    %v165 = vpop.f32.mrb[0].mxu0
    %v166 = vadd.f32 0.0, %v165
    %v167 = vpop.f32.mrb[0].mxu0
    %168 = vmatprep.mubr.f32.mxu0 0.0
    %169 = vmatmul.mubr.f32.gmra.mrb[0].mxu0 %v49
    %v170 = vpop.f32.mrb[0].mxu0
    %v171 = vadd.f32 0.0, %v170
    %v172 = vpop.f32.mrb[0].mxu0
    %173 = vmatprep.mubr.f32.mxu0 0.0
    %174 = vmatmul.mubr.f32.gmra.mrb[0].mxu0 %v52
    %v175 = vpop.f32.mrb[0].mxu0
    %v176 = vadd.f32 0.0, %v175
    %v177 = vpop.f32.mrb[0].mxu0
    %178 = vmatprep.mubr.f32.mxu0 0.0
    %179 = vmatmul.mubr.f32.gmra.mrb[0].mxu0 %v55
    %v180 = vpop.f32.mrb[0].mxu0
    %v181 = vadd.f32 0.0, %v180
    %v182 = vpop.f32.mrb[0].mxu0
    %183 = vmatprep.mubr.f32.mxu0 0.0
    %184 = vmatmul.mubr.f32.gmra.mrb[0].mxu0 %v58
    %v185 = vpop.f32.mrb[0].mxu0
    %v186 = vadd.f32 0.0, %v185
    %v187 = vpop.f32.mrb[0].mxu0
    %188 = vmatprep.mubr.f32.mxu0 0.0
    %189 = vmatmul.mubr.f32.gmra.mrb[0].mxu0 %v61
    %v190 = vpop.f32.mrb[0].mxu0
    %v191 = vadd.f32 0.0, %v190
    %v192 = vpop.f32.mrb[0].mxu0
    %193 = vmatprep.mubr.f32.mxu0 0.0
    %194 = vmatmul.mubr.f32.gmra.mrb[0].mxu0 %v64
    %v195 = vpop.f32.mrb[0].mxu0
    %v196 = vadd.f32 0.0, %v195
    %v197 = vpop.f32.mrb[0].mxu0
    %198 = vmatprep.mubr.f32.mxu0 0.0
    %199 = vmatmul.mubr.f32.gmra.mrb[0].mxu0 %v67
    %v200 = vpop.f32.mrb[0].mxu0
    %v201 = vadd.f32 0.0, %v200
    %v202 = vpop.f32.mrb[0].mxu0
    %203 = vmatprep.mubr.f32.mxu0 0.0
    %204 = vmatmul.mubr.f32.gmra.mrb[0].mxu0 %v70
    %v205 = vpop.f32.mrb[0].mxu0
    %v206 = vadd.f32 0.0, %v205
    %v207 = vpop.f32.mrb[0].mxu0
    %208 = vmatprep.mubr.f32.mxu0 0.0
    %209 = vmatmul.mubr.f32.gmra.mrb[0].mxu0 %v73
    %v210 = vpop.f32.mrb[0].mxu0
    %v211 = vadd.f32 0.0, %v210
    %v212 = vpop.f32.mrb[0].mxu0
    %213 = vmatprep.mubr.f32.mxu0 0.0
    %214 = vmatmul.mubr.f32.gmra.mrb[0].mxu0 %v76
    %v215 = vpop.f32.mrb[0].mxu0
    %v216 = vadd.f32 0.0, %v215
    %v217 = vpop.f32.mrb[0].mxu0
    %218 = vmatprep.mubr.f32.mxu0 0.0
    %219 = vmatmul.mubr.f32.gmra.mrb[0].mxu0 %v79
    %v220 = vpop.f32.mrb[0].mxu0
    %v221 = vadd.f32 0.0, %v220
    %v222 = vpop.f32.mrb[0].mxu0
    %223 = vmatprep.mubr.f32.mxu0 0.0
    %224 = vmatmul.mubr.f32.gmra.mrb[0].mxu0 %v82
    %v225 = vpop.f32.mrb[0].mxu0
    %v226 = vadd.f32 0.0, %v225
    %v227 = vpop.f32.mrb[0].mxu0
    %228 = vdwg.mxu0
    %v229 = vmax.f32 %v151, 0.0
    %v230 = vmax.f32 %v156, 0.0
    %v231 = vmax.f32 %v161, 0.0
    %v232 = vmax.f32 %v166, 0.0
    %v233 = vmax.f32 %v171, 0.0
    %v234 = vmax.f32 %v176, 0.0
    %v235 = vmax.f32 %v181, 0.0
    %v236 = vmax.f32 %v186, 0.0
    %v237 = vmax.f32 %v191, 0.0
    %v238 = vmax.f32 %v196, 0.0
    %v239 = vmax.f32 %v201, 0.0
    %v240 = vmax.f32 %v206, 0.0
    %v241 = vmax.f32 %v211, 0.0
    %v242 = vmax.f32 %v216, 0.0
    %v243 = vmax.f32 %v221, 0.0
    %v244 = vmax.f32 %v226, 0.0
    %v245 = vld [vmem:[%s2] sm:$0x7]
    %v246 = vld [vmem:[%s3] sm:$0x7]
    %248 = vset.pattern.permute.xlu0 0
    %249 = vperm.xlu0 %248, %v246
    %v250 = vpop.permute.xlu0 %249
    %252 = vmatprep.subr.mxu0 0.0
    %253 = vmatpush1.msra.mxu0 %v229
    %254 = vmatprep.subr.mxu0 0.0
    %255 = vmatpush1.msra.mxu0 %v230
    %256 = vmatprep.subr.mxu0 0.0
    %257 = vmatpush1.msra.mxu0 %v231
    %258 = vmatprep.subr.mxu0 0.0
    %259 = vmatpush1.msra.mxu0 %v232
    %260 = vmatprep.subr.mxu0 0.0
    %261 = vmatpush1.msra.mxu0 %v233
    %262 = vmatprep.subr.mxu0 0.0
    %263 = vmatpush1.msra.mxu0 %v234
    %264 = vmatprep.subr.mxu0 0.0
    %265 = vmatpush1.msra.mxu0 %v235
    %266 = vmatprep.subr.mxu0 0.0
    %267 = vmatpush1.msra.mxu0 %v236
    %268 = vmatprep.subr.mxu0 0.0
    %269 = vmatpush1.msra.mxu0 %v237
    %270 = vmatprep.subr.mxu0 0.0
    %271 = vmatpush1.msra.mxu0 %v238
    %272 = vmatprep.subr.mxu0 0.0
    %273 = vmatpush1.msra.mxu0 %v239
    %274 = vmatprep.subr.mxu0 0.0
    %275 = vmatpush1.msra.mxu0 %v240
    %276 = vmatprep.subr.mxu0 0.0
    %277 = vmatpush1.msra.mxu0 %v241
    %278 = vmatprep.subr.mxu0 0.0
    %279 = vmatpush1.msra.mxu0 %v242
    %280 = vmatprep.subr.mxu0 0.0
    %281 = vmatpush1.msra.mxu0 %v243
    %282 = vmatprep.subr.mxu0 0.0
    %283 = vmatpush1.msra.mxu0 %v244
    %284 = vmatprep.subr.mxu0 0.0
    %285 = vmatpush1.msra.mxu0 0.0
    %286 = vmatprep.subr.mxu0 0.0
    %287 = vmatpush1.msra.mxu0 0.0
    %288 = vmatprep.subr.mxu0 0.0
    %289 = vmatpush1.msra.mxu0 0.0
    %290 = vmatprep.subr.mxu0 0.0
    %291 = vmatpush1.msra.mxu0 0.0
    %292 = vmatprep.subr.mxu0 0.0
    %293 = vmatpush1.msra.mxu0 0.0
    %294 = vmatprep.subr.mxu0 0.0
    %295 = vmatpush1.msra.mxu0 0.0
    %296 = vmatprep.subr.mxu0 0.0
    %297 = vmatpush1.msra.mxu0 0.0
    %298 = vmatprep.subr.mxu0 0.0
    %299 = vmatpush1.msra.mxu0 0.0
    %300 = vmatprep.subr.mxu0 0.0
    %301 = vmatpush1.msra.mxu0 0.0
    %302 = vmatprep.subr.mxu0 0.0
    %303 = vmatpush1.msra.mxu0 0.0
    %304 = vmatprep.subr.mxu0 0.0
    %305 = vmatpush1.msra.mxu0 0.0
    %306 = vmatprep.subr.mxu0 0.0
    %307 = vmatpush1.msra.mxu0 0.0
    %308 = vmatprep.subr.mxu0 0.0
    %309 = vmatpush1.msra.mxu0 0.0
    %310 = vmatprep.subr.mxu0 0.0
    %311 = vmatpush1.msra.mxu0 0.0
    %312 = vmatprep.subr.mxu0 0.0
    %313 = vmatpush1.msra.mxu0 0.0
    %314 = vmatprep.subr.mxu0 0.0
    %315 = vmatpush1.msra.mxu0 0.0
    %316 = vmatprep.mubr.f32.mxu0 0.0
    %317 = vmatmul.mubr.f32.gmra.mrb[0].mxu0 %v245
    %v318 = vpop.f32.mrb[0].mxu0
    %v319 = vadd.f32 %v250, %v318
    %v320 = vpop.f32.mrb[0].mxu0
    %321 = vdwg.mxu0
    %vm322 = vcmask 59392
    %v323 = vsel %vm322, %v319, -inf
    %v324 = vrot.slane %v323, 4
    %v325 = vmax.f32 %v323, %v324
    %v326 = vrot.slane %v325, 2
    %v327 = vmax.f32 %v325, %v326
    %v328 = vrot.slane %v327, 1
    %v329 = vmax.f32 %v327, %v328
    %v330 = vsub.f32 %v319, %v329
    %v331 = vmul.f32 %v330, 1.442695
    %v332 = vpow.pop %v331
    %v333 = vsel %vm322, %v332, 0.0
    %v334 = vrot.slane %v333, 4
    %v335 = vadd.f32 %v333, %v334
    %v336 = vrot.slane %v335, 2
    %v337 = vadd.f32 %v335, %v336
    %v338 = vrot.slane %v337, 1
    %v339 = vadd.f32 %v337, %v338
    %v340 = vrcp.pop %v339
    %v341 = vmul.f32 %v332, %v340
    %342 = vst.msk [vmem:[#allocation2] sm:$0x7] %vm322, %v341
    // Predicated region
    $region18: #{tpu_custom_call.1} parent=1 // pred_check
      _
    $region19: #{tpu_custom_call.1} parent=1 // pred_check_branch
      %344 = sbr.rel (0) target = $region21
    $region20: #{tpu_custom_call.1} parent=1 // pred_region
      %s346 = ssub.s32 64, 64
      %347 = vsyncadd [#allocation3], %s346
      %s349 = sshll.u32 [#allocation2], 4
      %s350 = int_to_ptr.vmem [resolvable:$true] %s349
      %352 = dma.vmem_to_hbm [thread:$0]  %s350, 64, %s4, [#allocation3]
    $region21: #{tpu_custom_call.1} parent=1 // pred_fallthru
      _
    // Predicated region
    $region22: #{tpu_custom_call.1} parent=1 // pred_check
      _
    $region23: #{tpu_custom_call.1} parent=1 // pred_check_branch
      %354 = sbr.rel (0) target = $region25
    $region24: #{tpu_custom_call.1} parent=1 // pred_region
      %355 = dma.done [#allocation3], 64
    $region25: #{tpu_custom_call.1} parent=1 // pred_fallthru
      _
    %356 = vsyncpa [#allocation3], 1

</llo_original>
